<compile_context>
chip_gen: v5e
topology: v5e:2x2
jax: 0.10.0
libtpu: 0.0.40
codegen_flags: <defaults>
</compile_context>

<pallas_src>
import jax
import jax.numpy as jnp
from jax.experimental import pallas as pl
from jax.experimental.pallas import tpu as pltpu

H = 256   # tower hidden width
FH = 32   # final-MLP hidden width


def _round_up(a, m):
    return ((a + m - 1) // m) * m


# --------------------------------------------------------------------------
# Pallas kernel: full TwoTowerNet forward for one batch tile.
# --------------------------------------------------------------------------
def two_tower_kernel(x_ref, w1_ref, b1_ref, w2q_ref, b2q_ref,
                     w2p_ref, b2p_ref, fin_ref, o_ref):
    # Fused first layer: x [TB, 2E] (bf16) @ block-diag([w1q, w1p]) [2E, 2H] (bf16)
    # with f32 accumulation; cols [:H] = q tower, [H:] = p tower.
    h1 = jnp.dot(x_ref[...], w1_ref[...],
                 preferred_element_type=jnp.float32) + b1_ref[...]
    h1 = jnp.maximum(h1, 0.0).astype(jnp.bfloat16)          # [TB, 2H]

    # q tower second layer; reduce its norm immediately (short live range).
    q = jnp.maximum(
        jnp.dot(h1[:, :H], w2q_ref[...], preferred_element_type=jnp.float32)
        + b2q_ref[...], 0.0)                                 # [TB, H]
    qn = jnp.sqrt(jnp.sum(q * q, axis=1, keepdims=True))     # [TB, 1]

    # p tower second layer; then its norm and the q.p dot product.
    p = jnp.maximum(
        jnp.dot(h1[:, H:], w2p_ref[...], preferred_element_type=jnp.float32)
        + b2p_ref[...], 0.0)                                 # [TB, H]
    pn = jnp.sqrt(jnp.sum(p * p, axis=1, keepdims=True))     # [TB, 1]
    dot = jnp.sum(q * p, axis=1, keepdims=True)              # [TB, 1]

    # final_layers: Linear(3,32) -> ReLU -> Linear(32,1) -> Sigmoid
    # packed fin [8, 32]: rows 0..2 = wf1, row 3 = bf1, row 4 = wf2^T, row 5 = bf2.
    fin = fin_ref[...]
    h = jnp.maximum(
        dot * fin[0:1, :] + qn * fin[1:2, :] + pn * fin[2:3, :] + fin[3:4, :],
        0.0)                                                 # [TB, 32]
    logits = jnp.sum(h * fin[4:5, :], axis=1, keepdims=True) + fin[5:6, 0:1]
    o_ref[...] = jax.nn.sigmoid(logits)                      # [TB, 1]


# --------------------------------------------------------------------------
# Wrapper: batch-tiled pallas_call with weights pinned via constant index_maps.
# --------------------------------------------------------------------------
def two_tower_forward(x, kp, embedding_dim):
    B, F = x.shape
    assert F == 2 * embedding_dim

    # Batch tile selection:
    #   * small B: one padded tile, rounded to 16 rows (bf16 sublane packing).
    #   * large B: up to 1024 rows/tile, but keep >=2 grid steps so v7x's two
    #     TensorCores both get work (dimension_semantics=("parallel",)).
    if B <= 256:
        TB = max(16, _round_up(B, 16))
    else:
        TB = min(1024, _round_up(pl.cdiv(B, 2), 256))
    Bp = _round_up(B, TB)

    # Cast x to bf16 once in the wrapper (it is the only streaming operand);
    # the pad is applied to the bf16 array so only one half-width copy exists.
    x = x.astype(jnp.bfloat16)
    if Bp != B:
        x = jnp.pad(x, ((0, Bp - B), (0, 0)))   # zero rows -> finite garbage, sliced off

    operands = (x, kp["w1"], kp["b1"], kp["w2q"], kp["b2q"],
                kp["w2p"], kp["b2p"], kp["fin"])

    const_spec = lambda a: pl.BlockSpec(a.shape, lambda i: (0, 0))  # VMEM-resident
    in_specs = [pl.BlockSpec((TB, F), lambda i: (i, 0))] + \
               [const_spec(a) for a in operands[1:]]

    # VMEM budget scales with the batch tile (weights + activations + buffers).
    vmem_limit = (32 << 20) if TB >= 512 else (16 << 20)

    out = pl.pallas_call(
        two_tower_kernel,
        out_shape=jax.ShapeDtypeStruct((Bp, 1), jnp.float32),
        grid=(Bp // TB,),
        in_specs=in_specs,
        out_specs=pl.BlockSpec((TB, 1), lambda i: (i, 0)),
        compiler_params=pltpu.CompilerParams(
            dimension_semantics=("parallel",),
            vmem_limit_bytes=vmem_limit),
    )(*operands)
    return out[:B]


# --------------------------------------------------------------------------
# Deterministic parameter init (PyTorch Linear-style uniform(-1/sqrt(in), +)).
# Raw per-layer params (reference) + packed kernel operands (packed ONCE).
# --------------------------------------------------------------------------
def init_params(key, embedding_dim):
    def linear(k, fan_in, fan_out):
        kw, kb = jax.random.split(k)
        bound = 1.0 / jnp.sqrt(fan_in)
        w = jax.random.uniform(kw, (fan_in, fan_out), jnp.float32, -bound, bound)  # [in, out]
        b = jax.random.uniform(kb, (1, fan_out), jnp.float32, -bound, bound)
        return w, b

    keys = jax.random.split(key, 6)
    E = embedding_dim
    w1q, b1q = linear(keys[0], E, H)
    w2q, b2q = linear(keys[1], H, H)
    w1p, b1p = linear(keys[2], E, H)
    w2p, b2p = linear(keys[3], H, H)
    wf1, bf1 = linear(keys[4], 3, FH)
    wf2, bf2 = linear(keys[5], FH, 1)

    return dict(
        w1q=w1q.astype(jnp.bfloat16), b1q=b1q,
        w2q=w2q.astype(jnp.bfloat16), b2q=b2q,
        w1p=w1p.astype(jnp.bfloat16), b1p=b1p,
        w2p=w2p.astype(jnp.bfloat16), b2p=b2p,
        wf1=wf1, bf1=bf1, wf2=wf2, bf2=bf2,
    )


def pack_params(raw, embedding_dim):
    E = embedding_dim
    # Block-diagonal fused first layer [2E, 2H] (bf16) + concatenated bias [1, 2H] (f32).
    w1 = jnp.zeros((2 * E, 2 * H), jnp.bfloat16)
    w1 = w1.at[:E, :H].set(raw["w1q"])
    w1 = w1.at[E:, H:].set(raw["w1p"])
    b1 = jnp.concatenate([raw["b1q"], raw["b1p"]], axis=1)

    # Pack the tiny final-MLP params into one [8, 32] f32 tile (one DMA).
    fin = jnp.zeros((8, FH), jnp.float32)
    fin = fin.at[0:3, :].set(raw["wf1"])          # rows 0..2: wf1 [3, 32]
    fin = fin.at[3, :].set(raw["bf1"][0])         # row 3: bf1
    fin = fin.at[4, :].set(raw["wf2"][:, 0])      # row 4: wf2^T
    fin = fin.at[5, :].set(raw["bf2"][0, 0])      # row 5: bf2 (broadcast; lane 0 read)

    return dict(w1=w1, b1=b1,
                w2q=raw["w2q"], b2q=raw["b2q"],
                w2p=raw["w2p"], b2p=raw["b2p"],
                fin=fin)


# Pure-JAX reference (mirrors the PyTorch forward, same bf16 weights / f32 accum).
def reference_forward(x, raw, embedding_dim):
    E = embedding_dim
    xq = x[:, :E].astype(jnp.bfloat16)
    xp = x[:, E:].astype(jnp.bfloat16)
    q1 = jnp.maximum(jnp.dot(xq, raw["w1q"], preferred_element_type=jnp.float32)
                     + raw["b1q"], 0.0)
    q = jnp.maximum(jnp.dot(q1.astype(jnp.bfloat16), raw["w2q"],
                            preferred_element_type=jnp.float32) + raw["b2q"], 0.0)
    p1 = jnp.maximum(jnp.dot(xp, raw["w1p"], preferred_element_type=jnp.float32)
                     + raw["b1p"], 0.0)
    p = jnp.maximum(jnp.dot(p1.astype(jnp.bfloat16), raw["w2p"],
                            preferred_element_type=jnp.float32) + raw["b2p"], 0.0)
    dot = jnp.sum(q * p, axis=1, keepdims=True)
    qn = jnp.linalg.norm(q, axis=1, keepdims=True)
    pn = jnp.linalg.norm(p, axis=1, keepdims=True)
    feat = jnp.concatenate([dot, qn, pn], axis=1)
    h = jnp.maximum(feat @ raw["wf1"] + raw["bf1"], 0.0)
    return jax.nn.sigmoid(h @ raw["wf2"] + raw["bf2"])


if __name__ == "__main__":
    embedding_dim = 32

    key = jax.random.PRNGKey(0)
    k_x, k_p, k_x2 = jax.random.split(key, 3)
    raw = init_params(k_p, embedding_dim)
    kp = pack_params(raw, embedding_dim)

    # Small batch (single padded tile path).
    x = jax.random.normal(k_x, (8, 2 * embedding_dim), jnp.float32)
    out = jax.block_until_ready(two_tower_forward(x, kp, embedding_dim))
    ref = reference_forward(x, raw, embedding_dim)
    assert out.shape == (8, 1)
    assert jnp.allclose(out, ref, rtol=2e-2, atol=2e-3), "mismatch vs reference (B=8)"

    # Larger, non-multiple batch: exercises the multi-step batch grid + padding.
    x2 = jax.random.normal(k_x2, (300, 2 * embedding_dim), jnp.float32)
    out2 = jax.block_until_ready(two_tower_forward(x2, kp, embedding_dim))
    ref2 = reference_forward(x2, raw, embedding_dim)
    assert out2.shape == (300, 1)
    assert jnp.allclose(out2, ref2, rtol=2e-2, atol=2e-3), "mismatch vs reference (B=300)"

    print("KERNEL_OK")
</pallas_src>

<mosaic_0001>
module attributes {stable_mosaic.version = 11 : i64} {
  func.func @two_tower_kernel(%arg0: i32, %arg1: memref<16x64xbf16, #tpu.memory_space<vmem>>, %arg2: memref<64x512xbf16, #tpu.memory_space<vmem>>, %arg3: memref<1x512xf32, #tpu.memory_space<vmem>>, %arg4: memref<256x256xbf16, #tpu.memory_space<vmem>>, %arg5: memref<1x256xf32, #tpu.memory_space<vmem>>, %arg6: memref<256x256xbf16, #tpu.memory_space<vmem>>, %arg7: memref<1x256xf32, #tpu.memory_space<vmem>>, %arg8: memref<8x32xf32, #tpu.memory_space<vmem>>, %arg9: memref<16x1xf32, #tpu.memory_space<vmem>>) attributes {dimension_semantics = [#tpu.dimension_semantics<parallel>], iteration_bounds = array<i64: 1>, scalar_prefetch = 0 : i64, scratch_operands = 0 : i64, tpu.core_type = #tpu.core_type<tc>, window_params = [{transform_indices = @transform_0, window_bounds = array<i64: 16, 64>}, {pipeline_mode = #tpu.pipeline_mode<synchronous>, transform_indices = @transform_1, window_bounds = array<i64: 64, 512>}, {pipeline_mode = #tpu.pipeline_mode<synchronous>, transform_indices = @transform_2, window_bounds = array<i64: 1, 512>}, {pipeline_mode = #tpu.pipeline_mode<synchronous>, transform_indices = @transform_3, window_bounds = array<i64: 256, 256>}, {pipeline_mode = #tpu.pipeline_mode<synchronous>, transform_indices = @transform_4, window_bounds = array<i64: 1, 256>}, {pipeline_mode = #tpu.pipeline_mode<synchronous>, transform_indices = @transform_5, window_bounds = array<i64: 256, 256>}, {pipeline_mode = #tpu.pipeline_mode<synchronous>, transform_indices = @transform_6, window_bounds = array<i64: 1, 256>}, {pipeline_mode = #tpu.pipeline_mode<synchronous>, transform_indices = @transform_7, window_bounds = array<i64: 8, 32>}, {transform_indices = @transform_8, window_bounds = array<i64: 16, 1>}]} {
    %c0 = arith.constant 0 : index
    %c0_0 = arith.constant 0 : index
    %0 = vector.load %arg1[%c0, %c0_0] : memref<16x64xbf16, #tpu.memory_space<vmem>>, vector<16x64xbf16>
    %c0_1 = arith.constant 0 : index
    %c0_2 = arith.constant 0 : index
    %1 = vector.load %arg2[%c0_1, %c0_2] : memref<64x512xbf16, #tpu.memory_space<vmem>>, vector<64x512xbf16>
    %cst = arith.constant dense<0.000000e+00> : vector<16x512xf32>
    %2 = tpu.matmul %0, %1, %cst {dimension_numbers = #tpu.dot_dimension_numbers<[1], [0], [0], [1], [0, 0, 1, 1], [], []>} : vector<16x64xbf16>, vector<64x512xbf16>, vector<16x512xf32> -> vector<16x512xf32>
    %c0_3 = arith.constant 0 : index
    %c0_4 = arith.constant 0 : index
    %3 = vector.load %arg3[%c0_3, %c0_4] : memref<1x512xf32, #tpu.memory_space<vmem>>, vector<1x512xf32>
    %4 = vector.broadcast %3 : vector<1x512xf32> to vector<16x512xf32>
    %5 = arith.addf %2, %4 : vector<16x512xf32>
    %cst_5 = arith.constant 0.000000e+00 : f32
    %6 = vector.broadcast %cst_5 : f32 to vector<16x512xf32>
    %7 = arith.maximumf %5, %6 : vector<16x512xf32>
    %8 = arith.truncf %7 : vector<16x512xf32> to vector<16x512xbf16>
    %9 = vector.extract_strided_slice %8 {offsets = [0, 0], sizes = [16, 256], strides = [1, 1]} : vector<16x512xbf16> to vector<16x256xbf16>
    %c0_6 = arith.constant 0 : index
    %c0_7 = arith.constant 0 : index
    %10 = vector.load %arg4[%c0_6, %c0_7] : memref<256x256xbf16, #tpu.memory_space<vmem>>, vector<256x256xbf16>
    %cst_8 = arith.constant dense<0.000000e+00> : vector<16x256xf32>
    %11 = tpu.matmul %9, %10, %cst_8 {dimension_numbers = #tpu.dot_dimension_numbers<[1], [0], [0], [1], [0, 0, 1, 1], [], []>} : vector<16x256xbf16>, vector<256x256xbf16>, vector<16x256xf32> -> vector<16x256xf32>
    %c0_9 = arith.constant 0 : index
    %c0_10 = arith.constant 0 : index
    %12 = vector.load %arg5[%c0_9, %c0_10] : memref<1x256xf32, #tpu.memory_space<vmem>>, vector<1x256xf32>
    %13 = vector.broadcast %12 : vector<1x256xf32> to vector<16x256xf32>
    %14 = arith.addf %11, %13 : vector<16x256xf32>
    %cst_11 = arith.constant 0.000000e+00 : f32
    %15 = vector.broadcast %cst_11 : f32 to vector<16x256xf32>
    %16 = arith.maximumf %14, %15 : vector<16x256xf32>
    %17 = arith.mulf %16, %16 : vector<16x256xf32>
    %cst_12 = arith.constant dense<0.000000e+00> : vector<16xf32>
    %18 = vector.multi_reduction <add>, %17, %cst_12 [1] : vector<16x256xf32> to vector<16xf32>
    %19 = vector.shape_cast %18 : vector<16xf32> to vector<16x1xf32>
    %20 = math.sqrt %19 : vector<16x1xf32>
    %21 = vector.extract_strided_slice %8 {offsets = [0, 256], sizes = [16, 256], strides = [1, 1]} : vector<16x512xbf16> to vector<16x256xbf16>
    %c0_13 = arith.constant 0 : index
    %c0_14 = arith.constant 0 : index
    %22 = vector.load %arg6[%c0_13, %c0_14] : memref<256x256xbf16, #tpu.memory_space<vmem>>, vector<256x256xbf16>
    %cst_15 = arith.constant dense<0.000000e+00> : vector<16x256xf32>
    %23 = tpu.matmul %21, %22, %cst_15 {dimension_numbers = #tpu.dot_dimension_numbers<[1], [0], [0], [1], [0, 0, 1, 1], [], []>} : vector<16x256xbf16>, vector<256x256xbf16>, vector<16x256xf32> -> vector<16x256xf32>
    %c0_16 = arith.constant 0 : index
    %c0_17 = arith.constant 0 : index
    %24 = vector.load %arg7[%c0_16, %c0_17] : memref<1x256xf32, #tpu.memory_space<vmem>>, vector<1x256xf32>
    %25 = vector.broadcast %24 : vector<1x256xf32> to vector<16x256xf32>
    %26 = arith.addf %23, %25 : vector<16x256xf32>
    %cst_18 = arith.constant 0.000000e+00 : f32
    %27 = vector.broadcast %cst_18 : f32 to vector<16x256xf32>
    %28 = arith.maximumf %26, %27 : vector<16x256xf32>
    %29 = arith.mulf %28, %28 : vector<16x256xf32>
    %cst_19 = arith.constant dense<0.000000e+00> : vector<16xf32>
    %30 = vector.multi_reduction <add>, %29, %cst_19 [1] : vector<16x256xf32> to vector<16xf32>
    %31 = vector.shape_cast %30 : vector<16xf32> to vector<16x1xf32>
    %32 = math.sqrt %31 : vector<16x1xf32>
    %33 = arith.mulf %16, %28 : vector<16x256xf32>
    %cst_20 = arith.constant dense<0.000000e+00> : vector<16xf32>
    %34 = vector.multi_reduction <add>, %33, %cst_20 [1] : vector<16x256xf32> to vector<16xf32>
    %35 = vector.shape_cast %34 : vector<16xf32> to vector<16x1xf32>
    %c0_21 = arith.constant 0 : index
    %c0_22 = arith.constant 0 : index
    %36 = vector.load %arg8[%c0_21, %c0_22] : memref<8x32xf32, #tpu.memory_space<vmem>>, vector<8x32xf32>
    %37 = vector.extract_strided_slice %36 {offsets = [0, 0], sizes = [1, 32], strides = [1, 1]} : vector<8x32xf32> to vector<1x32xf32>
    %38 = vector.broadcast %35 : vector<16x1xf32> to vector<16x32xf32>
    %39 = vector.broadcast %37 : vector<1x32xf32> to vector<16x32xf32>
    %40 = arith.mulf %38, %39 : vector<16x32xf32>
    %41 = vector.extract_strided_slice %36 {offsets = [1, 0], sizes = [1, 32], strides = [1, 1]} : vector<8x32xf32> to vector<1x32xf32>
    %42 = vector.broadcast %20 : vector<16x1xf32> to vector<16x32xf32>
    %43 = vector.broadcast %41 : vector<1x32xf32> to vector<16x32xf32>
    %44 = arith.mulf %42, %43 : vector<16x32xf32>
    %45 = arith.addf %40, %44 : vector<16x32xf32>
    %46 = vector.extract_strided_slice %36 {offsets = [2, 0], sizes = [1, 32], strides = [1, 1]} : vector<8x32xf32> to vector<1x32xf32>
    %47 = vector.broadcast %32 : vector<16x1xf32> to vector<16x32xf32>
    %48 = vector.broadcast %46 : vector<1x32xf32> to vector<16x32xf32>
    %49 = arith.mulf %47, %48 : vector<16x32xf32>
    %50 = arith.addf %45, %49 : vector<16x32xf32>
    %51 = vector.extract_strided_slice %36 {offsets = [3, 0], sizes = [1, 32], strides = [1, 1]} : vector<8x32xf32> to vector<1x32xf32>
    %52 = vector.broadcast %51 : vector<1x32xf32> to vector<16x32xf32>
    %53 = arith.addf %50, %52 : vector<16x32xf32>
    %cst_23 = arith.constant 0.000000e+00 : f32
    %54 = vector.broadcast %cst_23 : f32 to vector<16x32xf32>
    %55 = arith.maximumf %53, %54 : vector<16x32xf32>
    %56 = vector.extract_strided_slice %36 {offsets = [4, 0], sizes = [1, 32], strides = [1, 1]} : vector<8x32xf32> to vector<1x32xf32>
    %57 = vector.broadcast %56 : vector<1x32xf32> to vector<16x32xf32>
    %58 = arith.mulf %55, %57 : vector<16x32xf32>
    %cst_24 = arith.constant dense<0.000000e+00> : vector<16xf32>
    %59 = vector.multi_reduction <add>, %58, %cst_24 [1] : vector<16x32xf32> to vector<16xf32>
    %60 = vector.shape_cast %59 : vector<16xf32> to vector<16x1xf32>
    %61 = vector.extract_strided_slice %36 {offsets = [5, 0], sizes = [1, 1], strides = [1, 1]} : vector<8x32xf32> to vector<1x1xf32>
    %62 = vector.broadcast %61 : vector<1x1xf32> to vector<16x1xf32>
    %63 = arith.addf %60, %62 : vector<16x1xf32>
    %64 = arith.negf %63 : vector<16x1xf32>
    %65 = math.exp %64 : vector<16x1xf32>
    %cst_25 = arith.constant 1.000000e+00 : f32
    %66 = vector.broadcast %cst_25 : f32 to vector<16x1xf32>
    %67 = arith.addf %66, %65 : vector<16x1xf32>
    %68 = arith.divf %66, %67 : vector<16x1xf32>
    %c0_26 = arith.constant 0 : index
    %c0_27 = arith.constant 0 : index
    %69 = vector.load %arg9[%c0_26, %c0_27] : memref<16x1xf32, #tpu.memory_space<vmem>>, vector<16x1xf32>
    tpu.vector_store %arg9[%c0_26, %c0_27], %68 {strides = array<i32>} : memref<16x1xf32, #tpu.memory_space<vmem>>, vector<16x1xf32>,
    return
  }
  func.func @transform_0(%arg0: i32) -> (i32, i32) {
    %c0_i32 = arith.constant 0 : i32
    %c0_i32_0 = arith.constant 0 : i32
    return %arg0, %c0_i32 : i32, i32
  }
  func.func @transform_1(%arg0: i32) -> (i32, i32) {
    %c0_i32 = arith.constant 0 : i32
    %c0_i32_0 = arith.constant 0 : i32
    %c0_i32_1 = arith.constant 0 : i32
    return %c0_i32, %c0_i32_0 : i32, i32
  }
  func.func @transform_2(%arg0: i32) -> (i32, i32) {
    %c0_i32 = arith.constant 0 : i32
    %c0_i32_0 = arith.constant 0 : i32
    %c0_i32_1 = arith.constant 0 : i32
    return %c0_i32, %c0_i32_0 : i32, i32
  }
  func.func @transform_3(%arg0: i32) -> (i32, i32) {
    %c0_i32 = arith.constant 0 : i32
    %c0_i32_0 = arith.constant 0 : i32
    %c0_i32_1 = arith.constant 0 : i32
    return %c0_i32, %c0_i32_0 : i32, i32
  }
  func.func @transform_4(%arg0: i32) -> (i32, i32) {
    %c0_i32 = arith.constant 0 : i32
    %c0_i32_0 = arith.constant 0 : i32
    %c0_i32_1 = arith.constant 0 : i32
    return %c0_i32, %c0_i32_0 : i32, i32
  }
  func.func @transform_5(%arg0: i32) -> (i32, i32) {
    %c0_i32 = arith.constant 0 : i32
    %c0_i32_0 = arith.constant 0 : i32
    %c0_i32_1 = arith.constant 0 : i32
    return %c0_i32, %c0_i32_0 : i32, i32
  }
  func.func @transform_6(%arg0: i32) -> (i32, i32) {
    %c0_i32 = arith.constant 0 : i32
    %c0_i32_0 = arith.constant 0 : i32
    %c0_i32_1 = arith.constant 0 : i32
    return %c0_i32, %c0_i32_0 : i32, i32
  }
  func.func @transform_7(%arg0: i32) -> (i32, i32) {
    %c0_i32 = arith.constant 0 : i32
    %c0_i32_0 = arith.constant 0 : i32
    %c0_i32_1 = arith.constant 0 : i32
    return %c0_i32, %c0_i32_0 : i32, i32
  }
  func.func @transform_8(%arg0: i32) -> (i32, i32) {
    %c0_i32 = arith.constant 0 : i32
    %c0_i32_0 = arith.constant 0 : i32
    return %arg0, %c0_i32 : i32, i32
  }
}

</mosaic_0001>

<llo_original>
// kernel: tpu_custom_call.1
$region0: #{tpu_custom_call.1}
  #allocation0 [shape = 'u32[]', space=smem, size = 0x4, offset = 0x4, fixed_abs, tag = 'smem constant byte address 0x4 - core index']
  #allocation1 [shape = 'u32[72,128]{1,0:T(1,128)}', space=vmem, size = 0x9000, scoped, tag = 'internal scratch']
  %s0 = inlined_call_operand.hbm [shape: bf16[16,64], index: 0, kind: input, shape index: {}]
  %s1 = inlined_call_operand.hbm [shape: bf16[64,512], index: 1, kind: input, shape index: {}]
  %s2 = inlined_call_operand.hbm [shape: f32[1,512], index: 2, kind: input, shape index: {}]
  %s3 = inlined_call_operand.hbm [shape: bf16[256,256], index: 3, kind: input, shape index: {}]
  %s4 = inlined_call_operand.vmem [shape: f32[1,256], index: 4, kind: input, shape index: {}]
  %s5 = inlined_call_operand.hbm [shape: bf16[256,256], index: 5, kind: input, shape index: {}]
  %s6 = inlined_call_operand.vmem [shape: f32[1,256], index: 6, kind: input, shape index: {}]
  %s7 = inlined_call_operand.hbm [shape: f32[8,32], index: 7, kind: input, shape index: {}]
  %s8 = inlined_call_operand.vmem [shape: f32[16,1], index: 8, kind: output, shape index: {}]
  %s9 = sld [smem:[#allocation0]]
  $region66: #{tpu_custom_call.1} parent=0
    _
  %s11 = ssub.s32 1, %s9
  %s12 = scalar_select 0, %s11, %s9
  $region1: #{tpu_custom_call.1} parent=0
    #allocation2 [shape = 'u8[4096]{0}', space=vmem, size = 0x1000, scoped, tag = 'input window, operand 0, single buffered']
    #allocation3 [shape = 's32[1]{0}', space=sflag, size = 0x4, scoped, tag = 'scoped memory for tpu_custom_call.1']
    #allocation4 [shape = 'u8[65536]{0}', space=vmem, size = 0x10000, scoped, tag = 'input window, operand 1, single buffered']
    #allocation5 [shape = 's32[1]{0}', space=sflag, size = 0x4, scoped, tag = 'scoped memory for tpu_custom_call.1']
    #allocation6 [shape = 'u8[2048]{0}', space=vmem, size = 0x800, scoped, tag = 'input window, operand 2, single buffered']
    #allocation7 [shape = 'u8[131072]{0}', space=vmem, size = 0x20000, scoped, tag = 'input window, operand 3, single buffered']
    #allocation8 [shape = 's32[1]{0}', space=sflag, size = 0x4, scoped, tag = 'scoped memory for tpu_custom_call.1']
    #allocation9 [shape = 'u8[131072]{0}', space=vmem, size = 0x20000, scoped, tag = 'input window, operand 5, single buffered']
    #allocation10 [shape = 'u8[4096]{0}', space=vmem, size = 0x1000, scoped, tag = 'input window, operand 7, single buffered']
    #allocation11 [shape = 's32[1]{0}', space=sflag, size = 0x4, scoped, tag = 'scoped memory for tpu_custom_call.1']
    %13 = vsyncpa [#allocation3], 0
    %14 = vsyncpa [#allocation5], 0
    %15 = vsyncpa [#allocation8], 0
    %16 = vsyncpa [#allocation11], 0
    // Predicated region
    $region2: #{tpu_custom_call.1} parent=1 // pred_check
      _
    $region3: #{tpu_custom_call.1} parent=1 // pred_check_branch
      %18 = sbr.rel (0) target = $region5
    $region4: #{tpu_custom_call.1} parent=1 // pred_region
      %20 = vsyncadd [#allocation3], 0
      %s21 = sshll.u32 %s0, 4
      %s22 = int_to_ptr.hbm [resolvable:$true] %s21
      %s23 = sshll.u32 [#allocation2], 4
      %s24 = int_to_ptr.vmem [resolvable:$true] %s23
      %29 = dma.hbm_to_vmem [thread:$0]  %s22, 128, %s24, [#allocation3], 64, 64, 4
    $region5: #{tpu_custom_call.1} parent=1 // pred_fallthru
      _
    // Predicated region
    $region6: #{tpu_custom_call.1} parent=1 // pred_check
      _
    $region7: #{tpu_custom_call.1} parent=1 // pred_check_branch
      %31 = sbr.rel (0) target = $region9
    $region8: #{tpu_custom_call.1} parent=1 // pred_region
      %33 = vsyncadd [#allocation5], 0
      %s34 = sshll.u32 %s1, 4
      %s35 = int_to_ptr.hbm [resolvable:$true] %s34
      %s36 = sshll.u32 [#allocation4], 4
      %s37 = int_to_ptr.vmem [resolvable:$true] %s36
      %42 = dma.hbm_to_vmem [thread:$0]  %s35, 2048, %s37, [#allocation5], 256, 256, 16
    $region9: #{tpu_custom_call.1} parent=1 // pred_fallthru
      _
    // Predicated region
    $region10: #{tpu_custom_call.1} parent=1 // pred_check
      _
    $region11: #{tpu_custom_call.1} parent=1 // pred_check_branch
      %44 = sbr.rel (0) target = $region13
    $region12: #{tpu_custom_call.1} parent=1 // pred_region
      %46 = vsyncadd [#allocation5], 0
      %s48 = sshll.u32 %s2, 4
      %s49 = int_to_ptr.hbm [resolvable:$true] %s48
      %s50 = sshll.u32 [#allocation6], 4
      %s51 = int_to_ptr.vmem [resolvable:$true] %s50
      %53 = dma.hbm_to_vmem [thread:$0]  %s49, 64, %s51, [#allocation5]
    $region13: #{tpu_custom_call.1} parent=1 // pred_fallthru
      _
    // Predicated region
    $region14: #{tpu_custom_call.1} parent=1 // pred_check
      _
    $region15: #{tpu_custom_call.1} parent=1 // pred_check_branch
      %55 = sbr.rel (0) target = $region17
    $region16: #{tpu_custom_call.1} parent=1 // pred_region
      %57 = vsyncadd [#allocation8], 0
      %s58 = sshll.u32 %s3, 4
      %s59 = int_to_ptr.hbm [resolvable:$true] %s58
      %s60 = sshll.u32 [#allocation7], 4
      %s61 = int_to_ptr.vmem [resolvable:$true] %s60
      %66 = dma.hbm_to_vmem [thread:$0]  %s59, 4096, %s61, [#allocation8], 128, 128, 8
    $region17: #{tpu_custom_call.1} parent=1 // pred_fallthru
      _
    // Predicated region
    $region18: #{tpu_custom_call.1} parent=1 // pred_check
      _
    $region19: #{tpu_custom_call.1} parent=1 // pred_check_branch
      %68 = sbr.rel (0) target = $region21
    $region20: #{tpu_custom_call.1} parent=1 // pred_region
      _
    $region21: #{tpu_custom_call.1} parent=1 // pred_fallthru
      _
    // Predicated region
    $region22: #{tpu_custom_call.1} parent=1 // pred_check
      _
    $region23: #{tpu_custom_call.1} parent=1 // pred_check_branch
      %70 = sbr.rel (0) target = $region25
    $region24: #{tpu_custom_call.1} parent=1 // pred_region
      %72 = vsyncadd [#allocation8], 0
      %s73 = sshll.u32 %s5, 4
      %s74 = int_to_ptr.hbm [resolvable:$true] %s73
      %s75 = sshll.u32 [#allocation9], 4
      %s76 = int_to_ptr.vmem [resolvable:$true] %s75
      %81 = dma.hbm_to_vmem [thread:$0]  %s74, 4096, %s76, [#allocation8], 128, 128, 8
    $region25: #{tpu_custom_call.1} parent=1 // pred_fallthru
      _
    // Predicated region
    $region26: #{tpu_custom_call.1} parent=1 // pred_check
      _
    $region27: #{tpu_custom_call.1} parent=1 // pred_check_branch
      %83 = sbr.rel (0) target = $region29
    $region28: #{tpu_custom_call.1} parent=1 // pred_region
      _
    $region29: #{tpu_custom_call.1} parent=1 // pred_fallthru
      _
    // Predicated region
    $region30: #{tpu_custom_call.1} parent=1 // pred_check
      _
    $region31: #{tpu_custom_call.1} parent=1 // pred_check_branch
      %85 = sbr.rel (0) target = $region33
    $region32: #{tpu_custom_call.1} parent=1 // pred_region
      %87 = vsyncadd [#allocation11], 0
      %s89 = sshll.u32 %s7, 4
      %s90 = int_to_ptr.hbm [resolvable:$true] %s89
      %s91 = sshll.u32 [#allocation10], 4
      %s92 = int_to_ptr.vmem [resolvable:$true] %s91
      %94 = dma.hbm_to_vmem [thread:$0]  %s90, 128, %s92, [#allocation11]
    $region33: #{tpu_custom_call.1} parent=1 // pred_fallthru
      _
    // Predicated region
    $region34: #{tpu_custom_call.1} parent=1 // pred_check
      _
    $region35: #{tpu_custom_call.1} parent=1 // pred_check_branch
      %96 = sbr.rel (0) target = $region37
    $region36: #{tpu_custom_call.1} parent=1 // pred_region
      %98 = dma.done [#allocation3], 128
    $region37: #{tpu_custom_call.1} parent=1 // pred_fallthru
      _
    // Predicated region
    $region38: #{tpu_custom_call.1} parent=1 // pred_check
      _
    $region39: #{tpu_custom_call.1} parent=1 // pred_check_branch
      %100 = sbr.rel (0) target = $region41
    $region40: #{tpu_custom_call.1} parent=1 // pred_region
      %102 = dma.done [#allocation5], 2048
    $region41: #{tpu_custom_call.1} parent=1 // pred_fallthru
      _
    // Predicated region
    $region42: #{tpu_custom_call.1} parent=1 // pred_check
      _
    $region43: #{tpu_custom_call.1} parent=1 // pred_check_branch
      %104 = sbr.rel (0) target = $region45
    $region44: #{tpu_custom_call.1} parent=1 // pred_region
      %106 = dma.done [#allocation5], 64
    $region45: #{tpu_custom_call.1} parent=1 // pred_fallthru
      _
    // Predicated region
    $region46: #{tpu_custom_call.1} parent=1 // pred_check
      _
    $region47: #{tpu_custom_call.1} parent=1 // pred_check_branch
      %108 = sbr.rel (0) target = $region49
    $region48: #{tpu_custom_call.1} parent=1 // pred_region
      %110 = dma.done [#allocation8], 4096
    $region49: #{tpu_custom_call.1} parent=1 // pred_fallthru
      _
    // Predicated region
    $region50: #{tpu_custom_call.1} parent=1 // pred_check
      _
    $region51: #{tpu_custom_call.1} parent=1 // pred_check_branch
      %112 = sbr.rel (0) target = $region53
    $region52: #{tpu_custom_call.1} parent=1 // pred_region
      %114 = dma.done [#allocation8], 4096
    $region53: #{tpu_custom_call.1} parent=1 // pred_fallthru
      _
    // Predicated region
    $region54: #{tpu_custom_call.1} parent=1 // pred_check
      _
    $region55: #{tpu_custom_call.1} parent=1 // pred_check_branch
      %116 = sbr.rel (0) target = $region57
    $region56: #{tpu_custom_call.1} parent=1 // pred_region
      %118 = dma.done [#allocation11], 128
    $region57: #{tpu_custom_call.1} parent=1 // pred_fallthru
      _
    %v120 = vld [vmem:[#allocation2] sm:$0xf]
    %v121 = vld [vmem:[#allocation2 + $0x4] sm:$0xf]
    %v122 = vld [vmem:[#allocation4] sm:$0xff]
    %v123 = vld [vmem:[#allocation4 + $0x8] sm:$0xff]
    %v124 = vld [vmem:[#allocation4 + $0x10] sm:$0xff]
    %v125 = vld [vmem:[#allocation4 + $0x18] sm:$0xff]
    %v126 = vld [vmem:[#allocation4 + $0x20] sm:$0xff]
    %v127 = vld [vmem:[#allocation4 + $0x28] sm:$0xff]
    %v128 = vld [vmem:[#allocation4 + $0x30] sm:$0xff]
    %v129 = vld [vmem:[#allocation4 + $0x38] sm:$0xff]
    %v130 = vld [vmem:[#allocation4 + $0x40] sm:$0xff]
    %v131 = vld [vmem:[#allocation4 + $0x48] sm:$0xff]
    %v132 = vld [vmem:[#allocation4 + $0x50] sm:$0xff]
    %v133 = vld [vmem:[#allocation4 + $0x58] sm:$0xff]
    %v134 = vld [vmem:[#allocation4 + $0x60] sm:$0xff]
    %v135 = vld [vmem:[#allocation4 + $0x68] sm:$0xff]
    %v136 = vld [vmem:[#allocation4 + $0x70] sm:$0xff]
    %v137 = vld [vmem:[#allocation4 + $0x78] sm:$0xff]
    %v138 = vld [vmem:[#allocation6] sm:$0xf]
    %v140 = vperm.slane %v138, 0
    %v141 = vperm.slane %v138, 1
    %v142 = vperm.slane %v138, 2
    %v143 = vperm.slane %v138, 3
    %v150 = vunpack.c.l.b16 %v120
    %v151 = vunpack.c.l.b16 %v121
    %v152 = vpack.c.b16 %v151, %v150
    %v169 = vunpack.c.l.b16 %v122
    %v170 = vunpack.c.h.b16 %v122
    %v171 = vunpack.c.l.b16 %v123
    %v172 = vunpack.c.h.b16 %v123
    %v173 = vunpack.c.l.b16 %v124
    %v174 = vunpack.c.h.b16 %v124
    %v175 = vunpack.c.l.b16 %v125
    %v176 = vunpack.c.h.b16 %v125
    %v177 = vunpack.c.l.b16 %v126
    %v178 = vunpack.c.h.b16 %v126
    %v179 = vunpack.c.l.b16 %v127
    %v180 = vunpack.c.h.b16 %v127
    %v181 = vunpack.c.l.b16 %v128
    %v182 = vunpack.c.h.b16 %v128
    %v183 = vunpack.c.l.b16 %v129
    %v184 = vunpack.c.h.b16 %v129
    %v185 = vunpack.c.l.b16 %v130
    %v186 = vunpack.c.h.b16 %v130
    %v187 = vunpack.c.l.b16 %v131
    %v188 = vunpack.c.h.b16 %v131
    %v189 = vunpack.c.l.b16 %v132
    %v190 = vunpack.c.h.b16 %v132
    %v191 = vunpack.c.l.b16 %v133
    %v192 = vunpack.c.h.b16 %v133
    %v193 = vunpack.c.l.b16 %v134
    %v194 = vunpack.c.h.b16 %v134
    %v195 = vunpack.c.l.b16 %v135
    %v196 = vunpack.c.h.b16 %v135
    %v197 = vunpack.c.l.b16 %v136
    %v198 = vunpack.c.h.b16 %v136
    %v199 = vunpack.c.l.b16 %v137
    %v200 = vunpack.c.h.b16 %v137
    %v201 = vpack.c.b16 %v173, %v169
    %v202 = vpack.c.b16 %v174, %v170
    %v203 = vpack.c.b16 %v175, %v171
    %v204 = vpack.c.b16 %v176, %v172
    %v205 = vpack.c.b16 %v181, %v177
    %v206 = vpack.c.b16 %v182, %v178
    %v207 = vpack.c.b16 %v183, %v179
    %v208 = vpack.c.b16 %v184, %v180
    %v209 = vpack.c.b16 %v189, %v185
    %v210 = vpack.c.b16 %v190, %v186
    %v211 = vpack.c.b16 %v191, %v187
    %v212 = vpack.c.b16 %v192, %v188
    %v213 = vpack.c.b16 %v197, %v193
    %v214 = vpack.c.b16 %v198, %v194
    %v215 = vpack.c.b16 %v199, %v195
    %v216 = vpack.c.b16 %v200, %v196
    %vm233 = vcmask 523264
    %v235 = vsel %vm233, %v152, 0
    %237 = vmatpush.bf16.msra.mxu0 0
    %238 = vmatpush.bf16.msra.mxu0 0
    %239 = vmatpush.bf16.msra.mxu0 0
    %240 = vmatpush.bf16.msra.mxu0 0
    %241 = vmatpush.bf16.msra.mxu0 %v213
    %242 = vmatpush.bf16.msra.mxu0 %v209
    %243 = vmatpush.bf16.msra.mxu0 %v205
    %244 = vmatpush.bf16.msra.mxu0 %v201
    %245 = vmatmul.bf16.gmra.mxu0 %v235
    %v246 = vpop.f32.mrf.mxu0
    %v247 = vadd.f32 %v140, %v246
    %v248 = vpop.f32.mrf.mxu0
    %v249 = vadd.f32 %v140, %v248
    %250 = vdwg.mxu0
    %251 = vmatpush.bf16.msra.mxu0 0
    %252 = vmatpush.bf16.msra.mxu0 0
    %253 = vmatpush.bf16.msra.mxu0 0
    %254 = vmatpush.bf16.msra.mxu0 0
    %255 = vmatpush.bf16.msra.mxu0 %v214
    %256 = vmatpush.bf16.msra.mxu0 %v210
    %257 = vmatpush.bf16.msra.mxu0 %v206
    %258 = vmatpush.bf16.msra.mxu0 %v202
    %259 = vmatmul.bf16.gmra.mxu0 %v235
    %v260 = vpop.f32.mrf.mxu0
    %v261 = vadd.f32 %v141, %v260
    %v262 = vpop.f32.mrf.mxu0
    %v263 = vadd.f32 %v141, %v262
    %264 = vdwg.mxu0
    %265 = vmatpush.bf16.msra.mxu0 0
    %266 = vmatpush.bf16.msra.mxu0 0
    %267 = vmatpush.bf16.msra.mxu0 0
    %268 = vmatpush.bf16.msra.mxu0 0
    %269 = vmatpush.bf16.msra.mxu0 %v215
    %270 = vmatpush.bf16.msra.mxu0 %v211
    %271 = vmatpush.bf16.msra.mxu0 %v207
    %272 = vmatpush.bf16.msra.mxu0 %v203
    %273 = vmatmul.bf16.gmra.mxu0 %v235
    %v274 = vpop.f32.mrf.mxu0
    %v275 = vadd.f32 %v142, %v274
    %v276 = vpop.f32.mrf.mxu0
    %v277 = vadd.f32 %v142, %v276
    %278 = vdwg.mxu0
    %279 = vmatpush.bf16.msra.mxu0 0
    %280 = vmatpush.bf16.msra.mxu0 0
    %281 = vmatpush.bf16.msra.mxu0 0
    %282 = vmatpush.bf16.msra.mxu0 0
    %283 = vmatpush.bf16.msra.mxu0 %v216
    %284 = vmatpush.bf16.msra.mxu0 %v212
    %285 = vmatpush.bf16.msra.mxu0 %v208
    %286 = vmatpush.bf16.msra.mxu0 %v204
    %287 = vmatmul.bf16.gmra.mxu0 %v235
    %v288 = vpop.f32.mrf.mxu0
    %v289 = vadd.f32 %v143, %v288
    %v290 = vpop.f32.mrf.mxu0
    %v291 = vadd.f32 %v143, %v290
    %292 = vdwg.mxu0
    %v293 = vmax.f32 %v247, 0.0
    %v294 = vmax.f32 %v261, 0.0
    %v295 = vmax.f32 %v275, 0.0
    %v296 = vmax.f32 %v289, 0.0
    %v297 = vmax.f32 %v249, 0.0
    %v298 = vmax.f32 %v263, 0.0
    %v299 = vmax.f32 %v277, 0.0
    %v300 = vmax.f32 %v291, 0.0
    %v301 = vpack.c.bf16 %v294, %v293
    %v302 = vpack.c.bf16 %v296, %v295
    %v303 = vpack.c.bf16 %v298, %v297
    %v304 = vpack.c.bf16 %v300, %v299
    %v305 = vld [vmem:[#allocation7] sm:$0xff]
    %v306 = vld [vmem:[#allocation7 + $0x8] sm:$0xff]
    %v307 = vld [vmem:[#allocation7 + $0x10] sm:$0xff]
    %v308 = vld [vmem:[#allocation7 + $0x18] sm:$0xff]
    %v309 = vld [vmem:[#allocation7 + $0x20] sm:$0xff]
    %v310 = vld [vmem:[#allocation7 + $0x28] sm:$0xff]
    %v311 = vld [vmem:[#allocation7 + $0x30] sm:$0xff]
    %v312 = vld [vmem:[#allocation7 + $0x38] sm:$0xff]
    %v313 = vld [vmem:[#allocation7 + $0x40] sm:$0xff]
    %v314 = vld [vmem:[#allocation7 + $0x48] sm:$0xff]
    %v315 = vld [vmem:[#allocation7 + $0x50] sm:$0xff]
    %v316 = vld [vmem:[#allocation7 + $0x58] sm:$0xff]
    %v317 = vld [vmem:[#allocation7 + $0x60] sm:$0xff]
    %v318 = vld [vmem:[#allocation7 + $0x68] sm:$0xff]
    %v319 = vld [vmem:[#allocation7 + $0x70] sm:$0xff]
    %v320 = vld [vmem:[#allocation7 + $0x78] sm:$0xff]
    %v321 = vld [vmem:[#allocation7 + $0x80] sm:$0xff]
    %v322 = vld [vmem:[#allocation7 + $0x88] sm:$0xff]
    %v323 = vld [vmem:[#allocation7 + $0x90] sm:$0xff]
    %v324 = vld [vmem:[#allocation7 + $0x98] sm:$0xff]
    %v325 = vld [vmem:[#allocation7 + $0xa0] sm:$0xff]
    %v326 = vld [vmem:[#allocation7 + $0xa8] sm:$0xff]
    %v327 = vld [vmem:[#allocation7 + $0xb0] sm:$0xff]
    %v328 = vld [vmem:[#allocation7 + $0xb8] sm:$0xff]
    %v329 = vld [vmem:[#allocation7 + $0xc0] sm:$0xff]
    %v330 = vld [vmem:[#allocation7 + $0xc8] sm:$0xff]
    %v331 = vld [vmem:[#allocation7 + $0xd0] sm:$0xff]
    %v332 = vld [vmem:[#allocation7 + $0xd8] sm:$0xff]
    %v333 = vld [vmem:[#allocation7 + $0xe0] sm:$0xff]
    %v334 = vld [vmem:[#allocation7 + $0xe8] sm:$0xff]
    %v335 = vld [vmem:[#allocation7 + $0xf0] sm:$0xff]
    %v336 = vld [vmem:[#allocation7 + $0xf8] sm:$0xff]
    %v337 = vld [vmem:[%s4] sm:$0x3]
    %v339 = vperm.slane %v337, 0
    %v340 = vperm.slane %v337, 1
    %v345 = vunpack.c.l.b16 %v301
    %v346 = vunpack.c.h.b16 %v301
    %v347 = vunpack.c.l.b16 %v303
    %v348 = vunpack.c.h.b16 %v303
    %v349 = vpack.c.b16 %v347, %v345
    %v350 = vpack.c.b16 %v348, %v346
    %v385 = vunpack.c.l.b16 %v305
    %v386 = vunpack.c.h.b16 %v305
    %v387 = vunpack.c.l.b16 %v306
    %v388 = vunpack.c.h.b16 %v306
    %v389 = vunpack.c.l.b16 %v307
    %v390 = vunpack.c.h.b16 %v307
    %v391 = vunpack.c.l.b16 %v308
    %v392 = vunpack.c.h.b16 %v308
    %v393 = vunpack.c.l.b16 %v309
    %v394 = vunpack.c.h.b16 %v309
    %v395 = vunpack.c.l.b16 %v310
    %v396 = vunpack.c.h.b16 %v310
    %v397 = vunpack.c.l.b16 %v311
    %v398 = vunpack.c.h.b16 %v311
    %v399 = vunpack.c.l.b16 %v312
    %v400 = vunpack.c.h.b16 %v312
    %v401 = vunpack.c.l.b16 %v313
    %v402 = vunpack.c.h.b16 %v313
    %v403 = vunpack.c.l.b16 %v314
    %v404 = vunpack.c.h.b16 %v314
    %v405 = vunpack.c.l.b16 %v315
    %v406 = vunpack.c.h.b16 %v315
    %v407 = vunpack.c.l.b16 %v316
    %v408 = vunpack.c.h.b16 %v316
    %v409 = vunpack.c.l.b16 %v317
    %v410 = vunpack.c.h.b16 %v317
    %v411 = vunpack.c.l.b16 %v318
    %v412 = vunpack.c.h.b16 %v318
    %v413 = vunpack.c.l.b16 %v319
    %v414 = vunpack.c.h.b16 %v319
    %v415 = vunpack.c.l.b16 %v320
    %v416 = vunpack.c.h.b16 %v320
    %v417 = vunpack.c.l.b16 %v321
    %v418 = vunpack.c.h.b16 %v321
    %v419 = vunpack.c.l.b16 %v322
    %v420 = vunpack.c.h.b16 %v322
    %v421 = vunpack.c.l.b16 %v323
    %v422 = vunpack.c.h.b16 %v323
    %v423 = vunpack.c.l.b16 %v324
    %v424 = vunpack.c.h.b16 %v324
    %v425 = vunpack.c.l.b16 %v325
    %v426 = vunpack.c.h.b16 %v325
    %v427 = vunpack.c.l.b16 %v326
    %v428 = vunpack.c.h.b16 %v326
    %v429 = vunpack.c.l.b16 %v327
    %v430 = vunpack.c.h.b16 %v327
    %v431 = vunpack.c.l.b16 %v328
    %v432 = vunpack.c.h.b16 %v328
    %v433 = vunpack.c.l.b16 %v329
    %v434 = vunpack.c.h.b16 %v329
    %v435 = vunpack.c.l.b16 %v330
    %v436 = vunpack.c.h.b16 %v330
    %v437 = vunpack.c.l.b16 %v331
    %v438 = vunpack.c.h.b16 %v331
    %v439 = vunpack.c.l.b16 %v332
    %v440 = vunpack.c.h.b16 %v332
    %v441 = vunpack.c.l.b16 %v333
    %v442 = vunpack.c.h.b16 %v333
    %v443 = vunpack.c.l.b16 %v334
    %v444 = vunpack.c.h.b16 %v334
    %v445 = vunpack.c.l.b16 %v335
    %v446 = vunpack.c.h.b16 %v335
    %v447 = vunpack.c.l.b16 %v336
    %v448 = vunpack.c.h.b16 %v336
    %v449 = vpack.c.b16 %v387, %v385
    %v450 = vpack.c.b16 %v388, %v386
    %v451 = vpack.c.b16 %v391, %v389
    %v452 = vpack.c.b16 %v392, %v390
    %v453 = vpack.c.b16 %v395, %v393
    %v454 = vpack.c.b16 %v396, %v394
    %v455 = vpack.c.b16 %v399, %v397
    %v456 = vpack.c.b16 %v400, %v398
    %v457 = vpack.c.b16 %v403, %v401
    %v458 = vpack.c.b16 %v404, %v402
    %v459 = vpack.c.b16 %v407, %v405
    %v460 = vpack.c.b16 %v408, %v406
    %v461 = vpack.c.b16 %v411, %v409
    %v462 = vpack.c.b16 %v412, %v410
    %v463 = vpack.c.b16 %v415, %v413
    %v464 = vpack.c.b16 %v416, %v414
    %v465 = vpack.c.b16 %v419, %v417
    %v466 = vpack.c.b16 %v420, %v418
    %v467 = vpack.c.b16 %v423, %v421
    %v468 = vpack.c.b16 %v424, %v422
    %v469 = vpack.c.b16 %v427, %v425
    %v470 = vpack.c.b16 %v428, %v426
    %v471 = vpack.c.b16 %v431, %v429
    %v472 = vpack.c.b16 %v432, %v430
    %v473 = vpack.c.b16 %v435, %v433
    %v474 = vpack.c.b16 %v436, %v434
    %v475 = vpack.c.b16 %v439, %v437
    %v476 = vpack.c.b16 %v440, %v438
    %v477 = vpack.c.b16 %v443, %v441
    %v478 = vpack.c.b16 %v444, %v442
    %v479 = vpack.c.b16 %v447, %v445
    %v480 = vpack.c.b16 %v448, %v446
    %513 = vmatpush.bf16.msra.mxu0 %v463
    %514 = vmatpush.bf16.msra.mxu0 %v461
    %515 = vmatpush.bf16.msra.mxu0 %v459
    %516 = vmatpush.bf16.msra.mxu0 %v457
    %517 = vmatpush.bf16.msra.mxu0 %v455
    %518 = vmatpush.bf16.msra.mxu0 %v453
    %519 = vmatpush.bf16.msra.mxu0 %v451
    %520 = vmatpush.bf16.msra.mxu0 %v449
    %521 = vmatmul.bf16.gmra.mxu0 %v349
    %v522 = vpop.f32.mrf.mxu0
    %v523 = vadd.f32 %v339, %v522
    %v524 = vpop.f32.mrf.mxu0
    %v525 = vadd.f32 %v339, %v524
    %526 = vdwg.mxu0
    %527 = vmatpush.bf16.msra.mxu0 %v479
    %528 = vmatpush.bf16.msra.mxu0 %v477
    %529 = vmatpush.bf16.msra.mxu0 %v475
    %530 = vmatpush.bf16.msra.mxu0 %v473
    %531 = vmatpush.bf16.msra.mxu0 %v471
    %532 = vmatpush.bf16.msra.mxu0 %v469
    %533 = vmatpush.bf16.msra.mxu0 %v467
    %534 = vmatpush.bf16.msra.mxu0 %v465
    %535 = vmatmul.bf16.gmra.mxu0 %v350
    %v536 = vpop.f32.mrf.mxu0
    %v537 = vadd.f32 %v523, %v536
    %v538 = vpop.f32.mrf.mxu0
    %v539 = vadd.f32 %v525, %v538
    %540 = vdwg.mxu0
    %541 = vmatpush.bf16.msra.mxu0 %v464
    %542 = vmatpush.bf16.msra.mxu0 %v462
    %543 = vmatpush.bf16.msra.mxu0 %v460
    %544 = vmatpush.bf16.msra.mxu0 %v458
    %545 = vmatpush.bf16.msra.mxu0 %v456
    %546 = vmatpush.bf16.msra.mxu0 %v454
    %547 = vmatpush.bf16.msra.mxu0 %v452
    %548 = vmatpush.bf16.msra.mxu0 %v450
    %549 = vmatmul.bf16.gmra.mxu0 %v349
    %v550 = vpop.f32.mrf.mxu0
    %v551 = vadd.f32 %v340, %v550
    %v552 = vpop.f32.mrf.mxu0
    %v553 = vadd.f32 %v340, %v552
    %554 = vdwg.mxu0
    %555 = vmatpush.bf16.msra.mxu0 %v480
    %556 = vmatpush.bf16.msra.mxu0 %v478
    %557 = vmatpush.bf16.msra.mxu0 %v476
    %558 = vmatpush.bf16.msra.mxu0 %v474
    %559 = vmatpush.bf16.msra.mxu0 %v472
    %560 = vmatpush.bf16.msra.mxu0 %v470
    %561 = vmatpush.bf16.msra.mxu0 %v468
    %562 = vmatpush.bf16.msra.mxu0 %v466
    %563 = vmatmul.bf16.gmra.mxu0 %v350
    %v564 = vpop.f32.mrf.mxu0
    %v565 = vadd.f32 %v551, %v564
    %v566 = vpop.f32.mrf.mxu0
    %v567 = vadd.f32 %v553, %v566
    %568 = vdwg.mxu0
    %v569 = vmax.f32 %v537, 0.0
    %v570 = vmax.f32 %v565, 0.0
    %v571 = vmax.f32 %v539, 0.0
    %v572 = vmax.f32 %v567, 0.0
    %v573 = vmul.f32 %v569, %v569
    %v574 = vmul.f32 %v570, %v570
    %v575 = vmul.f32 %v571, %v571
    %v576 = vmul.f32 %v572, %v572
    %v577 = vadd.f32 %v573, %v574
    %578 = vadd.xlane.f32.xlu0 %v577
    %v579 = vpop.xlane.xlu0 %578
    %v580 = vadd.f32 %v575, %v576
    %581 = vadd.xlane.f32.xlu0 %v580
    %v582 = vpop.xlane.xlu0 %581
    %v583 = vrsqrt.pop %v579
    %v584 = vmul.f32 %v583, %v579
    %v585 = vmul.f32 %v584, %v583
    %v586 = vmul.f32 0.5, %v585
    %v587 = vsub.f32 1.5, %v586
    %v588 = vmul.f32 %v583, %v587
    %v589 = vmul.f32 %v579, %v588
    %vm590 = vcmp.eq.f32.partialorder %v579, inf
    %v591 = vsel %vm590, %v579, %v589
    %vm592 = vcmp.eq.f32.partialorder %v579, 0.0
    %v593 = vand.u32 %v579, 2147483648
    %v594 = vsel %vm592, %v593, %v591
    %v595 = vrsqrt.pop %v582
    %v596 = vmul.f32 %v595, %v582
    %v597 = vmul.f32 %v596, %v595
    %v598 = vmul.f32 0.5, %v597
    %v599 = vsub.f32 1.5, %v598
    %v600 = vmul.f32 %v595, %v599
    %v601 = vmul.f32 %v582, %v600
    %vm602 = vcmp.eq.f32.partialorder %v582, inf
    %v603 = vsel %vm602, %v582, %v601
    %vm604 = vcmp.eq.f32.partialorder %v582, 0.0
    %v605 = vand.u32 %v582, 2147483648
    %v606 = vsel %vm604, %v605, %v603
    %v607 = vld [vmem:[#allocation9] sm:$0xff]
    %v608 = vld [vmem:[#allocation9 + $0x8] sm:$0xff]
    %v609 = vld [vmem:[#allocation9 + $0x10] sm:$0xff]
    %v610 = vld [vmem:[#allocation9 + $0x18] sm:$0xff]
    %v611 = vld [vmem:[#allocation9 + $0x20] sm:$0xff]
    %v612 = vld [vmem:[#allocation9 + $0x28] sm:$0xff]
    %v613 = vld [vmem:[#allocation9 + $0x30] sm:$0xff]
    %v614 = vld [vmem:[#allocation9 + $0x38] sm:$0xff]
    %v615 = vld [vmem:[#allocation9 + $0x40] sm:$0xff]
    %v616 = vld [vmem:[#allocation9 + $0x48] sm:$0xff]
    %v617 = vld [vmem:[#allocation9 + $0x50] sm:$0xff]
    %v618 = vld [vmem:[#allocation9 + $0x58] sm:$0xff]
    %v619 = vld [vmem:[#allocation9 + $0x60] sm:$0xff]
    %v620 = vld [vmem:[#allocation9 + $0x68] sm:$0xff]
    %v621 = vld [vmem:[#allocation9 + $0x70] sm:$0xff]
    %v622 = vld [vmem:[#allocation9 + $0x78] sm:$0xff]
    %v623 = vld [vmem:[#allocation9 + $0x80] sm:$0xff]
    %v624 = vld [vmem:[#allocation9 + $0x88] sm:$0xff]
    %v625 = vld [vmem:[#allocation9 + $0x90] sm:$0xff]
    %v626 = vld [vmem:[#allocation9 + $0x98] sm:$0xff]
    %v627 = vld [vmem:[#allocation9 + $0xa0] sm:$0xff]
    %v628 = vld [vmem:[#allocation9 + $0xa8] sm:$0xff]
    %v629 = vld [vmem:[#allocation9 + $0xb0] sm:$0xff]
    %v630 = vld [vmem:[#allocation9 + $0xb8] sm:$0xff]
    %v631 = vld [vmem:[#allocation9 + $0xc0] sm:$0xff]
    %v632 = vld [vmem:[#allocation9 + $0xc8] sm:$0xff]
    %v633 = vld [vmem:[#allocation9 + $0xd0] sm:$0xff]
    %v634 = vld [vmem:[#allocation9 + $0xd8] sm:$0xff]
    %v635 = vld [vmem:[#allocation9 + $0xe0] sm:$0xff]
    %v636 = vld [vmem:[#allocation9 + $0xe8] sm:$0xff]
    %v637 = vld [vmem:[#allocation9 + $0xf0] sm:$0xff]
    %v638 = vld [vmem:[#allocation9 + $0xf8] sm:$0xff]
    %v639 = vld [vmem:[%s6] sm:$0x3]
    %v641 = vperm.slane %v639, 0
    %v642 = vperm.slane %v639, 1
    %v647 = vunpack.c.l.b16 %v302
    %v648 = vunpack.c.h.b16 %v302
    %v649 = vunpack.c.l.b16 %v304
    %v650 = vunpack.c.h.b16 %v304
    %v651 = vpack.c.b16 %v649, %v647
    %v652 = vpack.c.b16 %v650, %v648
    %v687 = vunpack.c.l.b16 %v607
    %v688 = vunpack.c.h.b16 %v607
    %v689 = vunpack.c.l.b16 %v608
    %v690 = vunpack.c.h.b16 %v608
    %v691 = vunpack.c.l.b16 %v609
    %v692 = vunpack.c.h.b16 %v609
    %v693 = vunpack.c.l.b16 %v610
    %v694 = vunpack.c.h.b16 %v610
    %v695 = vunpack.c.l.b16 %v611
    %v696 = vunpack.c.h.b16 %v611
    %v697 = vunpack.c.l.b16 %v612
    %v698 = vunpack.c.h.b16 %v612
    %v699 = vunpack.c.l.b16 %v613
    %v700 = vunpack.c.h.b16 %v613
    %v701 = vunpack.c.l.b16 %v614
    %v702 = vunpack.c.h.b16 %v614
    %v703 = vunpack.c.l.b16 %v615
    %v704 = vunpack.c.h.b16 %v615
    %v705 = vunpack.c.l.b16 %v616
    %v706 = vunpack.c.h.b16 %v616
    %v707 = vunpack.c.l.b16 %v617
    %v708 = vunpack.c.h.b16 %v617
    %v709 = vunpack.c.l.b16 %v618
    %v710 = vunpack.c.h.b16 %v618
    %v711 = vunpack.c.l.b16 %v619
    %v712 = vunpack.c.h.b16 %v619
    %v713 = vunpack.c.l.b16 %v620
    %v714 = vunpack.c.h.b16 %v620
    %v715 = vunpack.c.l.b16 %v621
    %v716 = vunpack.c.h.b16 %v621
    %v717 = vunpack.c.l.b16 %v622
    %v718 = vunpack.c.h.b16 %v622
    %v719 = vunpack.c.l.b16 %v623
    %v720 = vunpack.c.h.b16 %v623
    %v721 = vunpack.c.l.b16 %v624
    %v722 = vunpack.c.h.b16 %v624
    %v723 = vunpack.c.l.b16 %v625
    %v724 = vunpack.c.h.b16 %v625
    %v725 = vunpack.c.l.b16 %v626
    %v726 = vunpack.c.h.b16 %v626
    %v727 = vunpack.c.l.b16 %v627
    %v728 = vunpack.c.h.b16 %v627
    %v729 = vunpack.c.l.b16 %v628
    %v730 = vunpack.c.h.b16 %v628
    %v731 = vunpack.c.l.b16 %v629
    %v732 = vunpack.c.h.b16 %v629
    %v733 = vunpack.c.l.b16 %v630
    %v734 = vunpack.c.h.b16 %v630
    %v735 = vunpack.c.l.b16 %v631
    %v736 = vunpack.c.h.b16 %v631
    %v737 = vunpack.c.l.b16 %v632
    %v738 = vunpack.c.h.b16 %v632
    %v739 = vunpack.c.l.b16 %v633
    %v740 = vunpack.c.h.b16 %v633
    %v741 = vunpack.c.l.b16 %v634
    %v742 = vunpack.c.h.b16 %v634
    %v743 = vunpack.c.l.b16 %v635
    %v744 = vunpack.c.h.b16 %v635
    %v745 = vunpack.c.l.b16 %v636
    %v746 = vunpack.c.h.b16 %v636
    %v747 = vunpack.c.l.b16 %v637
    %v748 = vunpack.c.h.b16 %v637
    %v749 = vunpack.c.l.b16 %v638
    %v750 = vunpack.c.h.b16 %v638
    %v751 = vpack.c.b16 %v689, %v687
    %v752 = vpack.c.b16 %v690, %v688
    %v753 = vpack.c.b16 %v693, %v691
    %v754 = vpack.c.b16 %v694, %v692
    %v755 = vpack.c.b16 %v697, %v695
    %v756 = vpack.c.b16 %v698, %v696
    %v757 = vpack.c.b16 %v701, %v699
    %v758 = vpack.c.b16 %v702, %v700
    %v759 = vpack.c.b16 %v705, %v703
    %v760 = vpack.c.b16 %v706, %v704
    %v761 = vpack.c.b16 %v709, %v707
    %v762 = vpack.c.b16 %v710, %v708
    %v763 = vpack.c.b16 %v713, %v711
    %v764 = vpack.c.b16 %v714, %v712
    %v765 = vpack.c.b16 %v717, %v715
    %v766 = vpack.c.b16 %v718, %v716
    %v767 = vpack.c.b16 %v721, %v719
    %v768 = vpack.c.b16 %v722, %v720
    %v769 = vpack.c.b16 %v725, %v723
    %v770 = vpack.c.b16 %v726, %v724
    %v771 = vpack.c.b16 %v729, %v727
    %v772 = vpack.c.b16 %v730, %v728
    %v773 = vpack.c.b16 %v733, %v731
    %v774 = vpack.c.b16 %v734, %v732
    %v775 = vpack.c.b16 %v737, %v735
    %v776 = vpack.c.b16 %v738, %v736
    %v777 = vpack.c.b16 %v741, %v739
    %v778 = vpack.c.b16 %v742, %v740
    %v779 = vpack.c.b16 %v745, %v743
    %v780 = vpack.c.b16 %v746, %v744
    %v781 = vpack.c.b16 %v749, %v747
    %v782 = vpack.c.b16 %v750, %v748
    %815 = vmatpush.bf16.msra.mxu0 %v765
    %816 = vmatpush.bf16.msra.mxu0 %v763
    %817 = vmatpush.bf16.msra.mxu0 %v761
    %818 = vmatpush.bf16.msra.mxu0 %v759
    %819 = vmatpush.bf16.msra.mxu0 %v757
    %820 = vmatpush.bf16.msra.mxu0 %v755
    %821 = vmatpush.bf16.msra.mxu0 %v753
    %822 = vmatpush.bf16.msra.mxu0 %v751
    %823 = vmatmul.bf16.gmra.mxu0 %v651
    %v824 = vpop.f32.mrf.mxu0
    %v825 = vadd.f32 %v641, %v824
    %v826 = vpop.f32.mrf.mxu0
    %v827 = vadd.f32 %v641, %v826
    %828 = vdwg.mxu0
    %829 = vmatpush.bf16.msra.mxu0 %v781
    %830 = vmatpush.bf16.msra.mxu0 %v779
    %831 = vmatpush.bf16.msra.mxu0 %v777
    %832 = vmatpush.bf16.msra.mxu0 %v775
    %833 = vmatpush.bf16.msra.mxu0 %v773
    %834 = vmatpush.bf16.msra.mxu0 %v771
    %835 = vmatpush.bf16.msra.mxu0 %v769
    %836 = vmatpush.bf16.msra.mxu0 %v767
    %837 = vmatmul.bf16.gmra.mxu0 %v652
    %v838 = vpop.f32.mrf.mxu0
    %v839 = vadd.f32 %v825, %v838
    %v840 = vpop.f32.mrf.mxu0
    %v841 = vadd.f32 %v827, %v840
    %842 = vdwg.mxu0
    %843 = vmatpush.bf16.msra.mxu0 %v766
    %844 = vmatpush.bf16.msra.mxu0 %v764
    %845 = vmatpush.bf16.msra.mxu0 %v762
    %846 = vmatpush.bf16.msra.mxu0 %v760
    %847 = vmatpush.bf16.msra.mxu0 %v758
    %848 = vmatpush.bf16.msra.mxu0 %v756
    %849 = vmatpush.bf16.msra.mxu0 %v754
    %850 = vmatpush.bf16.msra.mxu0 %v752
    %851 = vmatmul.bf16.gmra.mxu0 %v651
    %v852 = vpop.f32.mrf.mxu0
    %v853 = vadd.f32 %v642, %v852
    %v854 = vpop.f32.mrf.mxu0
    %v855 = vadd.f32 %v642, %v854
    %856 = vdwg.mxu0
    %857 = vmatpush.bf16.msra.mxu0 %v782
    %858 = vmatpush.bf16.msra.mxu0 %v780
    %859 = vmatpush.bf16.msra.mxu0 %v778
    %860 = vmatpush.bf16.msra.mxu0 %v776
    %861 = vmatpush.bf16.msra.mxu0 %v774
    %862 = vmatpush.bf16.msra.mxu0 %v772
    %863 = vmatpush.bf16.msra.mxu0 %v770
    %864 = vmatpush.bf16.msra.mxu0 %v768
    %865 = vmatmul.bf16.gmra.mxu0 %v652
    %v866 = vpop.f32.mrf.mxu0
    %v867 = vadd.f32 %v853, %v866
    %v868 = vpop.f32.mrf.mxu0
    %v869 = vadd.f32 %v855, %v868
    %870 = vdwg.mxu0
    %v871 = vmax.f32 %v839, 0.0
    %v872 = vmax.f32 %v867, 0.0
    %v873 = vmax.f32 %v841, 0.0
    %v874 = vmax.f32 %v869, 0.0
    %v875 = vmul.f32 %v871, %v871
    %v876 = vmul.f32 %v872, %v872
    %v877 = vmul.f32 %v873, %v873
    %v878 = vmul.f32 %v874, %v874
    %v879 = vadd.f32 %v875, %v876
    %880 = vadd.xlane.f32.xlu0 %v879
    %v881 = vpop.xlane.xlu0 %880
    %v882 = vadd.f32 %v877, %v878
    %883 = vadd.xlane.f32.xlu0 %v882
    %v884 = vpop.xlane.xlu0 %883
    %v885 = vrsqrt.pop %v881
    %v886 = vmul.f32 %v885, %v881
    %v887 = vmul.f32 %v886, %v885
    %v888 = vmul.f32 0.5, %v887
    %v889 = vsub.f32 1.5, %v888
    %v890 = vmul.f32 %v885, %v889
    %v891 = vmul.f32 %v881, %v890
    %vm892 = vcmp.eq.f32.partialorder %v881, inf
    %v893 = vsel %vm892, %v881, %v891
    %vm894 = vcmp.eq.f32.partialorder %v881, 0.0
    %v895 = vand.u32 %v881, 2147483648
    %v896 = vsel %vm894, %v895, %v893
    %v897 = vrsqrt.pop %v884
    %v898 = vmul.f32 %v897, %v884
    %v899 = vmul.f32 %v898, %v897
    %v900 = vmul.f32 0.5, %v899
    %v901 = vsub.f32 1.5, %v900
    %v902 = vmul.f32 %v897, %v901
    %v903 = vmul.f32 %v884, %v902
    %vm904 = vcmp.eq.f32.partialorder %v884, inf
    %v905 = vsel %vm904, %v884, %v903
    %vm906 = vcmp.eq.f32.partialorder %v884, 0.0
    %v907 = vand.u32 %v884, 2147483648
    %v908 = vsel %vm906, %v907, %v905
    %v909 = vmul.f32 %v569, %v871
    %v910 = vmul.f32 %v570, %v872
    %v911 = vmul.f32 %v571, %v873
    %v912 = vmul.f32 %v572, %v874
    %v913 = vadd.f32 %v909, %v910
    %914 = vadd.xlane.f32.xlu0 %v913
    %v915 = vpop.xlane.xlu0 %914
    %v916 = vadd.f32 %v911, %v912
    %917 = vadd.xlane.f32.xlu0 %v916
    %v918 = vpop.xlane.xlu0 %917
    %v919 = vld [vmem:[#allocation10] sm:$0xff]
    %v920 = vperm.slane %v919, 0
    %v921 = vmul.f32 %v915, %v920
    %v922 = vmul.f32 %v918, %v920
    %v923 = vperm.slane %v919, 1
    %v924 = vmul.f32 %v594, %v923
    %v925 = vmul.f32 %v606, %v923
    %v926 = vadd.f32 %v921, %v924
    %v927 = vadd.f32 %v922, %v925
    %v928 = vperm.slane %v919, 2
    %v929 = vmul.f32 %v896, %v928
    %v930 = vmul.f32 %v908, %v928
    %v931 = vadd.f32 %v926, %v929
    %v932 = vadd.f32 %v927, %v930
    %v933 = vperm.slane %v919, 3
    %v934 = vadd.f32 %v931, %v933
    %v935 = vadd.f32 %v932, %v933
    %v936 = vmax.f32 %v934, 0.0
    %v937 = vmax.f32 %v935, 0.0
    %v938 = vperm.slane %v919, 4
    %v939 = vmul.f32 %v936, %v938
    %v940 = vmul.f32 %v937, %v938
    %vm941 = vcmask 261120
    %v942 = vsel %vm941, %v939, 0.0
    %943 = vadd.xlane.f32.xlu0 %v942
    %v944 = vpop.xlane.xlu0 %943
    %v945 = vsel %vm941, %v940, 0.0
    %946 = vadd.xlane.f32.xlu0 %v945
    %v947 = vpop.xlane.xlu0 %946
    %v948 = vperm.slane %v919, 5
    %v949 = vadd.f32 %v944, %v948
    %v950 = vadd.f32 %v947, %v948
    %v951 = vxor.u32 %v949, 2147483648
    %v952 = vxor.u32 %v950, 2147483648
    %v953 = vmul.f32 %v951, 1.442695
    %v954 = vpow.pop %v953
    %v955 = vmul.f32 %v952, 1.442695
    %v956 = vpow.pop %v955
    %v957 = vadd.f32 %v954, 1.0
    %v958 = vadd.f32 %v956, 1.0
    %v959 = vrcp.pop %v957
    %v960 = vmul.f32 %v957, %v959
    %v961 = vsub.f32 1.0, %v960
    %v962 = vmul.f32 %v959, %v961
    %v963 = vadd.f32 %v959, %v962
    %vm964 = vweird.f32 %v957
    %vm965 = vweird.f32 %v959
    %vm966 = vmor %vm964, %vm965
    %v967 = vsel %vm966, %v959, %v963
    %v968 = vand.u32 2147483647, %v957
    %vm969 = vcmp.eq.f32.partialorder %v968, 8.507059e+37
    %v970 = vand.u32 %v957, 2147483648
    %v971 = vor.u32 1.1754944e-38, %v970
    %v972 = vsel %vm969, %v971, %v967
    %v973 = vmul.f32 1.0, %v972
    %v974 = vrcp.pop %v958
    %v975 = vmul.f32 %v958, %v974
    %v976 = vsub.f32 1.0, %v975
    %v977 = vmul.f32 %v974, %v976
    %v978 = vadd.f32 %v974, %v977
    %vm979 = vweird.f32 %v958
    %vm980 = vweird.f32 %v974
    %vm981 = vmor %vm979, %vm980
    %v982 = vsel %vm981, %v974, %v978
    %v983 = vand.u32 2147483647, %v958
    %vm984 = vcmp.eq.f32.partialorder %v983, 8.507059e+37
    %v985 = vand.u32 %v958, 2147483648
    %v986 = vor.u32 1.1754944e-38, %v985
    %v987 = vsel %vm984, %v986, %v982
    %v988 = vmul.f32 1.0, %v987
    %vm989 = vcmask 7168
    %990 = vst.msk [vmem:[%s8] sm:$0xff] %vm989, %v973
    %991 = vst.msk [vmem:[%s8 + $0x8] sm:$0xff] %vm989, %v988
    // Predicated region
    $region58: #{tpu_custom_call.1} parent=1 // pred_check
      _
    $region59: #{tpu_custom_call.1} parent=1 // pred_check_branch
      %993 = sbr.rel (0) target = $region61
    $region60: #{tpu_custom_call.1} parent=1 // pred_region
      _
    $region61: #{tpu_custom_call.1} parent=1 // pred_fallthru
      _
    // Predicated region
    $region62: #{tpu_custom_call.1} parent=1 // pred_check
      _
    $region63: #{tpu_custom_call.1} parent=1 // pred_check_branch
      %995 = sbr.rel (0) target = $region65
    $region64: #{tpu_custom_call.1} parent=1 // pred_region
      _
    $region65: #{tpu_custom_call.1} parent=1 // pred_fallthru
      _
    %996 = vsyncpa [#allocation3], 1
    %997 = vsyncpa [#allocation5], 1
    %998 = vsyncpa [#allocation8], 1
    %999 = vsyncpa [#allocation11], 1

</llo_original>
